<compile_context>
chip_gen: v6e
topology: v6e:2x2x1
jax: 0.10.0
libtpu: 0.0.40
codegen_flags: <defaults>
</compile_context>

<pallas_src>
import functools
import numpy as np
import jax
import jax.numpy as jnp
from jax.experimental import pallas as pl
from jax.experimental.pallas import tpu as pltpu


def _round_up(x, m):
    return ((x + m - 1) // m) * m


def _padded_block_bytes(shape, itemsize=4):
    """VMEM bytes for one block, including (8,128) tile padding of the last two dims."""
    if len(shape) == 1:
        return _round_up(shape[0], 128) * 8 * itemsize
    lead = 1
    for d in shape[:-2]:
        lead *= d
    return lead * _round_up(shape[-2], 8) * _round_up(shape[-1], 128) * itemsize


def _dwsconv_kernel(x_ref, dww_ref, dwb_ref, pww_ref, pwb_ref, o_ref, *,
                    K, W_pad, slab_l, num_tiles):
    # Per grid step (n, t):
    #   x_ref:   (1, C_in, L_in_alloc)   flattened zero-padded sample (constant over t)
    #   dww_ref: (K*K, C_in, tile_l)     depthwise weights, pre-broadcast along lanes (f32)
    #   dwb_ref: (C_in, tile_l)          depthwise bias,    pre-broadcast along lanes (f32)
    #   pww_ref: (C_in, C_out, tile_l)   pointwise weights, pre-broadcast along lanes (f32)
    #   pwb_ref: (C_out, tile_l)         pointwise bias,    pre-broadcast along lanes (f32)
    #   o_ref:   (1, C_out, tile_l)      lane-dense flattened output tile
    C_in = dwb_ref.shape[0]
    C_out = pwb_ref.shape[0]
    tile_l = o_ref.shape[2]

    # One slab load per step: covers the whole output tile plus the KxK halo.
    if num_tiles == 1:
        slab = x_ref[0].astype(jnp.float32)                       # (C_in, slab_l)
    else:
        start = pl.multiple_of(pl.program_id(1) * tile_l, 128)    # tile_l % 128 == 0
        slab = x_ref[0, :, pl.ds(start, slab_l)].astype(jnp.float32)

    # ---- depthwise KxK conv: each tap is a static lane shift of the flattened slab ----
    acc = dwb_ref[...]                                            # (C_in, tile_l), f32 bias
    for ky in range(K):
        for kx in range(K):
            s = ky * W_pad + kx                                    # flattened tap offset
            tap = slab[:, s:s + tile_l]                            # static lane shift (XLU)
            acc = acc + tap * dww_ref[ky * K + kx]                 # per-channel MAC (VPU)

    # ---- pointwise 1x1 conv: dense (C_out, tile_l) broadcast-MAC, single unmasked store ----
    # TODO(synk): route through the MXU (M=tile_l, K=C_in, N=C_out, f32 acc scratch)
    #             once C_in/C_out are large (>=64); tile N/K to 256 on v6e/v7x, 128 on v5e.
    out = pwb_ref[...]                                            # (C_out, tile_l), f32 bias
    for c in range(C_in):
        out = out + jnp.broadcast_to(acc[c:c + 1, :], (C_out, tile_l)) * pww_ref[c]
    o_ref[0] = out.astype(o_ref.dtype)


def depthwise_separable_conv(x_nchw, dw_w, dw_b, pw_w, pw_b, *, stride=1,
                             use_padding=True, max_tile_l=2048):
    """x_nchw: (N, C_in, H, W); dw_w: (C_in, 1, K, K); pw_w: (C_out, C_in, 1, 1)."""
    N, C_in, H, W = x_nchw.shape
    C_out = pw_w.shape[0]
    K = dw_w.shape[-1]
    # TODO(synk): stride != 1 not implemented (module default is stride=1).
    assert stride == 1, "only stride=1 supported"
    pad = (K + 1) // 2 if use_padding else 0

    H_pad, W_pad = H + 2 * pad, W + 2 * pad
    Hout, Wout = H_pad - K + 1, W_pad - K + 1

    LANE = 128
    L_out = Hout * W_pad                      # flattened output length (junk cols kept)
    L_out_pad = _round_up(L_out, LANE)

    # Lane-tile the flattened spatial axis; force >=2 grid steps when possible so both
    # v7x TensorCores get work even at N == 1.
    tile_l = min(L_out_pad, _round_up(max_tile_l, LANE))
    T = -(-L_out_pad // tile_l)
    if N * T < 2 and L_out_pad >= 2 * LANE:
        tile_l = _round_up(-(-L_out_pad // 2), LANE)
        T = -(-L_out_pad // tile_l)

    halo = (K - 1) * (W_pad + 1)              # max flattened tap offset
    halo_pad = _round_up(halo, LANE)
    slab_l = tile_l + halo_pad
    L_in_alloc = T * tile_l + halo_pad        # covers every tile's slab and all real data

    # Zero-pad spatially, flatten (H_pad, W_pad) onto the lane axis, pad to L_in_alloc.
    x_flat = jnp.pad(x_nchw, ((0, 0), (0, 0), (pad, pad), (pad, pad)))
    x_flat = x_flat.reshape(N, C_in, H_pad * W_pad)
    x_flat = jnp.pad(x_flat, ((0, 0), (0, 0), (0, L_in_alloc - H_pad * W_pad)))

    # Parameters: cast + pre-broadcast along lanes once here (hoisted out of the kernel's
    # unrolled K*K / C_in loops; JAX does not CSE casts/broadcasts).
    dww = jnp.transpose(dw_w[:, 0, :, :], (1, 2, 0)).reshape(K * K, C_in).astype(jnp.float32)
    dww_b = jnp.broadcast_to(dww[:, :, None], (K * K, C_in, tile_l))
    dwb_b = jnp.broadcast_to(dw_b.astype(jnp.float32)[:, None], (C_in, tile_l))
    pww = jnp.transpose(pw_w[:, :, 0, 0], (1, 0)).astype(jnp.float32)      # (C_in, C_out)
    pww_b = jnp.broadcast_to(pww[:, :, None], (C_in, C_out, tile_l))
    pwb_b = jnp.broadcast_to(pw_b.astype(jnp.float32)[:, None], (C_out, tile_l))

    # VMEM budget: (8,128)-padded block bytes, x2 double buffering per block, capped at
    # 75% of physical VMEM (48 MiB fallback) so v7x's 64 MiB is never fully claimed.
    # TODO(synk): for very large H*W, halo-tile the input block along the flattened axis
    #             (or single-buffer it) instead of keeping the full sample resident.
    block_shapes = [
        (1, C_in, L_in_alloc), (K * K, C_in, tile_l), (C_in, tile_l),
        (C_in, C_out, tile_l), (C_out, tile_l), (1, C_out, tile_l),
    ]
    est_vmem = sum(2 * _padded_block_bytes(s) for s in block_shapes)
    cap = 48 * 1024 * 1024
    try:
        info = pltpu.get_tpu_info()
        cap = int(getattr(info, "vmem_capacity_bytes", 64 * 1024 * 1024) * 3 // 4)
    except Exception:
        pass
    vmem_limit = int(min(max(4 * est_vmem, 16 * 1024 * 1024), cap))

    # Scheduling hints.
    flops = 2 * N * Hout * Wout * C_in * (K * K + C_out)
    bytes_accessed = 4 * (int(x_flat.size) + N * C_out * T * tile_l
                          + int(dww_b.size) + int(dwb_b.size)
                          + int(pww_b.size) + int(pwb_b.size))

    kernel = functools.partial(_dwsconv_kernel, K=K, W_pad=W_pad,
                               slab_l=slab_l, num_tiles=T)

    out_flat = pl.pallas_call(
        kernel,
        out_shape=jax.ShapeDtypeStruct((N, C_out, T * tile_l), x_nchw.dtype),
        grid_spec=pltpu.PrefetchScalarGridSpec(
            num_scalar_prefetch=0,
            grid=(N, T),
            in_specs=[
                # full flattened sample; block index constant over t -> fetched once per n
                pl.BlockSpec((1, C_in, L_in_alloc), lambda n, t: (n, 0, 0)),
                pl.BlockSpec((K * K, C_in, tile_l), lambda n, t: (0, 0, 0)),
                pl.BlockSpec((C_in, tile_l), lambda n, t: (0, 0)),
                pl.BlockSpec((C_in, C_out, tile_l), lambda n, t: (0, 0, 0)),
                pl.BlockSpec((C_out, tile_l), lambda n, t: (0, 0)),
            ],
            out_specs=pl.BlockSpec((1, C_out, tile_l), lambda n, t: (n, 0, t)),
        ),
        compiler_params=pltpu.CompilerParams(
            dimension_semantics=("parallel", "parallel"),
            vmem_limit_bytes=vmem_limit),
        cost_estimate=pl.CostEstimate(flops=int(flops), transcendentals=0,
                                      bytes_accessed=int(bytes_accessed)),
    )(x_flat, dww_b, dwb_b, pww_b, pwb_b)

    # Un-flatten: drop the lane padding, reshape to (Hout, W_pad), drop junk W columns.
    out = out_flat[:, :, :Hout * W_pad].reshape(N, C_out, Hout, W_pad)[:, :, :, :Wout]
    return out                                 # NCHW


def _reference(x, dw_w, dw_b, pw_w, pw_b, pad):
    """Pure-JAX reference (matches PyTorch conv semantics)."""
    C_in = x.shape[1]
    dn = ("NCHW", "OIHW", "NCHW")
    y = jax.lax.conv_general_dilated(
        x, dw_w, window_strides=(1, 1), padding=[(pad, pad), (pad, pad)],
        dimension_numbers=dn, feature_group_count=C_in)
    y = y + dw_b.reshape(1, -1, 1, 1)
    z = jax.lax.conv_general_dilated(
        y, pw_w, window_strides=(1, 1), padding=[(0, 0), (0, 0)],
        dimension_numbers=dn)
    return z + pw_b.reshape(1, -1, 1, 1)


if __name__ == "__main__":
    N, C_in, H, W = 2, 4, 16, 16
    C_out, K = 8, 3
    pad = (K + 1) // 2  # = 2, matches the PyTorch module

    key = jax.random.PRNGKey(0)
    k_x, k_dw, k_dwb, k_pw, k_pwb = jax.random.split(key, 5)
    x = jax.random.normal(k_x, (N, C_in, H, W), jnp.float32)
    # Deterministic synthetic parameters (shapes from nn.Conv2d in __init__).
    dw_w = 0.1 * jax.random.normal(k_dw, (C_in, 1, K, K), jnp.float32)
    dw_b = 0.1 * jax.random.normal(k_dwb, (C_in,), jnp.float32)
    pw_w = 0.1 * jax.random.normal(k_pw, (C_out, C_in, 1, 1), jnp.float32)
    pw_b = 0.1 * jax.random.normal(k_pwb, (C_out,), jnp.float32)

    out = depthwise_separable_conv(x, dw_w, dw_b, pw_w, pw_b)
    out = jax.block_until_ready(out)

    ref = _reference(x, dw_w, dw_b, pw_w, pw_b, pad)
    assert out.shape == (N, C_out, H + 2, W + 2), out.shape
    np.testing.assert_allclose(np.asarray(out), np.asarray(ref),
                               rtol=1e-5, atol=1e-5)
    print("KERNEL_OK")
</pallas_src>

<mosaic_0001>
module attributes {stable_mosaic.version = 11 : i64} {
  func.func @_dwsconv_kernel(%arg0: i32, %arg1: i32, %arg2: memref<1x4x512xf32, #tpu.memory_space<vmem>>, %arg3: memref<9x4x384xf32, #tpu.memory_space<vmem>>, %arg4: memref<4x384xf32, #tpu.memory_space<vmem>>, %arg5: memref<4x8x384xf32, #tpu.memory_space<vmem>>, %arg6: memref<8x384xf32, #tpu.memory_space<vmem>>, %arg7: memref<1x8x384xf32, #tpu.memory_space<vmem>>) attributes {dimension_semantics = [#tpu.dimension_semantics<parallel>, #tpu.dimension_semantics<parallel>], iteration_bounds = array<i64: 2, 1>, scalar_prefetch = 0 : i64, scratch_operands = 0 : i64, tpu.core_type = #tpu.core_type<tc>, window_params = [{transform_indices = @transform_0, window_bounds = array<i64: 1, 4, 512>}, {pipeline_mode = #tpu.pipeline_mode<synchronous>, transform_indices = @transform_1, window_bounds = array<i64: 9, 4, 384>}, {pipeline_mode = #tpu.pipeline_mode<synchronous>, transform_indices = @transform_2, window_bounds = array<i64: 4, 384>}, {pipeline_mode = #tpu.pipeline_mode<synchronous>, transform_indices = @transform_3, window_bounds = array<i64: 4, 8, 384>}, {pipeline_mode = #tpu.pipeline_mode<synchronous>, transform_indices = @transform_4, window_bounds = array<i64: 8, 384>}, {transform_indices = @transform_5, window_bounds = array<i64: 1, 8, 384>}]} {
    %c0 = arith.constant 0 : index
    %c0_0 = arith.constant 0 : index
    %c0_1 = arith.constant 0 : index
    %0 = vector.load %arg2[%c0, %c0_0, %c0_1] : memref<1x4x512xf32, #tpu.memory_space<vmem>>, vector<1x4x512xf32>
    %1 = vector.shape_cast %0 : vector<1x4x512xf32> to vector<4x512xf32>
    %c0_2 = arith.constant 0 : index
    %c0_3 = arith.constant 0 : index
    %2 = vector.load %arg4[%c0_2, %c0_3] : memref<4x384xf32, #tpu.memory_space<vmem>>, vector<4x384xf32>
    %3 = vector.extract_strided_slice %1 {offsets = [0, 0], sizes = [4, 384], strides = [1, 1]} : vector<4x512xf32> to vector<4x384xf32>
    %c0_4 = arith.constant 0 : index
    %c0_5 = arith.constant 0 : index
    %c0_6 = arith.constant 0 : index
    %4 = vector.load %arg3[%c0_4, %c0_5, %c0_6] : memref<9x4x384xf32, #tpu.memory_space<vmem>>, vector<1x4x384xf32>
    %5 = vector.shape_cast %4 : vector<1x4x384xf32> to vector<4x384xf32>
    %6 = arith.mulf %3, %5 : vector<4x384xf32>
    %7 = arith.addf %2, %6 : vector<4x384xf32>
    %8 = vector.extract_strided_slice %1 {offsets = [0, 1], sizes = [4, 384], strides = [1, 1]} : vector<4x512xf32> to vector<4x384xf32>
    %c1 = arith.constant 1 : index
    %c0_7 = arith.constant 0 : index
    %c0_8 = arith.constant 0 : index
    %9 = vector.load %arg3[%c1, %c0_7, %c0_8] : memref<9x4x384xf32, #tpu.memory_space<vmem>>, vector<1x4x384xf32>
    %10 = vector.shape_cast %9 : vector<1x4x384xf32> to vector<4x384xf32>
    %11 = arith.mulf %8, %10 : vector<4x384xf32>
    %12 = arith.addf %7, %11 : vector<4x384xf32>
    %13 = vector.extract_strided_slice %1 {offsets = [0, 2], sizes = [4, 384], strides = [1, 1]} : vector<4x512xf32> to vector<4x384xf32>
    %c2 = arith.constant 2 : index
    %c0_9 = arith.constant 0 : index
    %c0_10 = arith.constant 0 : index
    %14 = vector.load %arg3[%c2, %c0_9, %c0_10] : memref<9x4x384xf32, #tpu.memory_space<vmem>>, vector<1x4x384xf32>
    %15 = vector.shape_cast %14 : vector<1x4x384xf32> to vector<4x384xf32>
    %16 = arith.mulf %13, %15 : vector<4x384xf32>
    %17 = arith.addf %12, %16 : vector<4x384xf32>
    %18 = vector.extract_strided_slice %1 {offsets = [0, 20], sizes = [4, 384], strides = [1, 1]} : vector<4x512xf32> to vector<4x384xf32>
    %c3 = arith.constant 3 : index
    %c0_11 = arith.constant 0 : index
    %c0_12 = arith.constant 0 : index
    %19 = vector.load %arg3[%c3, %c0_11, %c0_12] : memref<9x4x384xf32, #tpu.memory_space<vmem>>, vector<1x4x384xf32>
    %20 = vector.shape_cast %19 : vector<1x4x384xf32> to vector<4x384xf32>
    %21 = arith.mulf %18, %20 : vector<4x384xf32>
    %22 = arith.addf %17, %21 : vector<4x384xf32>
    %23 = vector.extract_strided_slice %1 {offsets = [0, 21], sizes = [4, 384], strides = [1, 1]} : vector<4x512xf32> to vector<4x384xf32>
    %c4 = arith.constant 4 : index
    %c0_13 = arith.constant 0 : index
    %c0_14 = arith.constant 0 : index
    %24 = vector.load %arg3[%c4, %c0_13, %c0_14] : memref<9x4x384xf32, #tpu.memory_space<vmem>>, vector<1x4x384xf32>
    %25 = vector.shape_cast %24 : vector<1x4x384xf32> to vector<4x384xf32>
    %26 = arith.mulf %23, %25 : vector<4x384xf32>
    %27 = arith.addf %22, %26 : vector<4x384xf32>
    %28 = vector.extract_strided_slice %1 {offsets = [0, 22], sizes = [4, 384], strides = [1, 1]} : vector<4x512xf32> to vector<4x384xf32>
    %c5 = arith.constant 5 : index
    %c0_15 = arith.constant 0 : index
    %c0_16 = arith.constant 0 : index
    %29 = vector.load %arg3[%c5, %c0_15, %c0_16] : memref<9x4x384xf32, #tpu.memory_space<vmem>>, vector<1x4x384xf32>
    %30 = vector.shape_cast %29 : vector<1x4x384xf32> to vector<4x384xf32>
    %31 = arith.mulf %28, %30 : vector<4x384xf32>
    %32 = arith.addf %27, %31 : vector<4x384xf32>
    %33 = vector.extract_strided_slice %1 {offsets = [0, 40], sizes = [4, 384], strides = [1, 1]} : vector<4x512xf32> to vector<4x384xf32>
    %c6 = arith.constant 6 : index
    %c0_17 = arith.constant 0 : index
    %c0_18 = arith.constant 0 : index
    %34 = vector.load %arg3[%c6, %c0_17, %c0_18] : memref<9x4x384xf32, #tpu.memory_space<vmem>>, vector<1x4x384xf32>
    %35 = vector.shape_cast %34 : vector<1x4x384xf32> to vector<4x384xf32>
    %36 = arith.mulf %33, %35 : vector<4x384xf32>
    %37 = arith.addf %32, %36 : vector<4x384xf32>
    %38 = vector.extract_strided_slice %1 {offsets = [0, 41], sizes = [4, 384], strides = [1, 1]} : vector<4x512xf32> to vector<4x384xf32>
    %c7 = arith.constant 7 : index
    %c0_19 = arith.constant 0 : index
    %c0_20 = arith.constant 0 : index
    %39 = vector.load %arg3[%c7, %c0_19, %c0_20] : memref<9x4x384xf32, #tpu.memory_space<vmem>>, vector<1x4x384xf32>
    %40 = vector.shape_cast %39 : vector<1x4x384xf32> to vector<4x384xf32>
    %41 = arith.mulf %38, %40 : vector<4x384xf32>
    %42 = arith.addf %37, %41 : vector<4x384xf32>
    %43 = vector.extract_strided_slice %1 {offsets = [0, 42], sizes = [4, 384], strides = [1, 1]} : vector<4x512xf32> to vector<4x384xf32>
    %c8 = arith.constant 8 : index
    %c0_21 = arith.constant 0 : index
    %c0_22 = arith.constant 0 : index
    %44 = vector.load %arg3[%c8, %c0_21, %c0_22] : memref<9x4x384xf32, #tpu.memory_space<vmem>>, vector<1x4x384xf32>
    %45 = vector.shape_cast %44 : vector<1x4x384xf32> to vector<4x384xf32>
    %46 = arith.mulf %43, %45 : vector<4x384xf32>
    %47 = arith.addf %42, %46 : vector<4x384xf32>
    %c0_23 = arith.constant 0 : index
    %c0_24 = arith.constant 0 : index
    %48 = vector.load %arg6[%c0_23, %c0_24] : memref<8x384xf32, #tpu.memory_space<vmem>>, vector<8x384xf32>
    %49 = vector.extract_strided_slice %47 {offsets = [0, 0], sizes = [1, 384], strides = [1, 1]} : vector<4x384xf32> to vector<1x384xf32>
    %50 = vector.shape_cast %49 : vector<1x384xf32> to vector<1x384xf32>
    %51 = vector.broadcast %50 : vector<1x384xf32> to vector<8x384xf32>
    %c0_25 = arith.constant 0 : index
    %c0_26 = arith.constant 0 : index
    %c0_27 = arith.constant 0 : index
    %52 = vector.load %arg5[%c0_25, %c0_26, %c0_27] : memref<4x8x384xf32, #tpu.memory_space<vmem>>, vector<1x8x384xf32>
    %53 = vector.shape_cast %52 : vector<1x8x384xf32> to vector<8x384xf32>
    %54 = arith.mulf %51, %53 : vector<8x384xf32>
    %55 = arith.addf %48, %54 : vector<8x384xf32>
    %56 = vector.extract_strided_slice %47 {offsets = [1, 0], sizes = [1, 384], strides = [1, 1]} : vector<4x384xf32> to vector<1x384xf32>
    %57 = vector.shape_cast %56 : vector<1x384xf32> to vector<1x384xf32>
    %58 = vector.broadcast %57 : vector<1x384xf32> to vector<8x384xf32>
    %c1_28 = arith.constant 1 : index
    %c0_29 = arith.constant 0 : index
    %c0_30 = arith.constant 0 : index
    %59 = vector.load %arg5[%c1_28, %c0_29, %c0_30] : memref<4x8x384xf32, #tpu.memory_space<vmem>>, vector<1x8x384xf32>
    %60 = vector.shape_cast %59 : vector<1x8x384xf32> to vector<8x384xf32>
    %61 = arith.mulf %58, %60 : vector<8x384xf32>
    %62 = arith.addf %55, %61 : vector<8x384xf32>
    %63 = vector.extract_strided_slice %47 {offsets = [2, 0], sizes = [1, 384], strides = [1, 1]} : vector<4x384xf32> to vector<1x384xf32>
    %64 = vector.shape_cast %63 : vector<1x384xf32> to vector<1x384xf32>
    %65 = vector.broadcast %64 : vector<1x384xf32> to vector<8x384xf32>
    %c2_31 = arith.constant 2 : index
    %c0_32 = arith.constant 0 : index
    %c0_33 = arith.constant 0 : index
    %66 = vector.load %arg5[%c2_31, %c0_32, %c0_33] : memref<4x8x384xf32, #tpu.memory_space<vmem>>, vector<1x8x384xf32>
    %67 = vector.shape_cast %66 : vector<1x8x384xf32> to vector<8x384xf32>
    %68 = arith.mulf %65, %67 : vector<8x384xf32>
    %69 = arith.addf %62, %68 : vector<8x384xf32>
    %70 = vector.extract_strided_slice %47 {offsets = [3, 0], sizes = [1, 384], strides = [1, 1]} : vector<4x384xf32> to vector<1x384xf32>
    %71 = vector.shape_cast %70 : vector<1x384xf32> to vector<1x384xf32>
    %72 = vector.broadcast %71 : vector<1x384xf32> to vector<8x384xf32>
    %c3_34 = arith.constant 3 : index
    %c0_35 = arith.constant 0 : index
    %c0_36 = arith.constant 0 : index
    %73 = vector.load %arg5[%c3_34, %c0_35, %c0_36] : memref<4x8x384xf32, #tpu.memory_space<vmem>>, vector<1x8x384xf32>
    %74 = vector.shape_cast %73 : vector<1x8x384xf32> to vector<8x384xf32>
    %75 = arith.mulf %72, %74 : vector<8x384xf32>
    %76 = arith.addf %69, %75 : vector<8x384xf32>
    %c0_37 = arith.constant 0 : index
    %c0_38 = arith.constant 0 : index
    %c0_39 = arith.constant 0 : index
    %77 = vector.load %arg7[%c0_37, %c0_38, %c0_39] : memref<1x8x384xf32, #tpu.memory_space<vmem>>, vector<1x8x384xf32>
    %78 = vector.shape_cast %77 : vector<1x8x384xf32> to vector<8x384xf32>
    %79 = vector.shape_cast %76 : vector<8x384xf32> to vector<1x8x384xf32>
    tpu.vector_store %arg7[%c0_37, %c0_38, %c0_39], %79 {strides = array<i32>} : memref<1x8x384xf32, #tpu.memory_space<vmem>>, vector<1x8x384xf32>,
    return
  }
  func.func @transform_0(%arg0: i32, %arg1: i32) -> (i32, i32, i32) {
    %c0_i32 = arith.constant 0 : i32
    %c0_i32_0 = arith.constant 0 : i32
    %c0_i32_1 = arith.constant 0 : i32
    return %arg0, %c0_i32, %c0_i32_0 : i32, i32, i32
  }
  func.func @transform_1(%arg0: i32, %arg1: i32) -> (i32, i32, i32) {
    %c0_i32 = arith.constant 0 : i32
    %c0_i32_0 = arith.constant 0 : i32
    %c0_i32_1 = arith.constant 0 : i32
    %c0_i32_2 = arith.constant 0 : i32
    return %c0_i32, %c0_i32_0, %c0_i32_1 : i32, i32, i32
  }
  func.func @transform_2(%arg0: i32, %arg1: i32) -> (i32, i32) {
    %c0_i32 = arith.constant 0 : i32
    %c0_i32_0 = arith.constant 0 : i32
    %c0_i32_1 = arith.constant 0 : i32
    return %c0_i32, %c0_i32_0 : i32, i32
  }
  func.func @transform_3(%arg0: i32, %arg1: i32) -> (i32, i32, i32) {
    %c0_i32 = arith.constant 0 : i32
    %c0_i32_0 = arith.constant 0 : i32
    %c0_i32_1 = arith.constant 0 : i32
    %c0_i32_2 = arith.constant 0 : i32
    return %c0_i32, %c0_i32_0, %c0_i32_1 : i32, i32, i32
  }
  func.func @transform_4(%arg0: i32, %arg1: i32) -> (i32, i32) {
    %c0_i32 = arith.constant 0 : i32
    %c0_i32_0 = arith.constant 0 : i32
    %c0_i32_1 = arith.constant 0 : i32
    return %c0_i32, %c0_i32_0 : i32, i32
  }
  func.func @transform_5(%arg0: i32, %arg1: i32) -> (i32, i32, i32) {
    %c0_i32 = arith.constant 0 : i32
    %c0_i32_0 = arith.constant 0 : i32
    return %arg0, %c0_i32, %arg1 : i32, i32, i32
  }
}

</mosaic_0001>

<llo_original>
// kernel: tpu_custom_call.1
$region0: #{tpu_custom_call.1}
  #allocation0 [shape = 'u32[]', space=smem, size = 0x4, offset = 0x4, fixed_abs, tag = 'smem constant byte address 0x4 - core index']
  #allocation1 [shape = 'u32[144,128]{1,0:T(1,128)}', space=vmem, size = 0x12000, scoped, tag = 'internal scratch']
  %s0 = inlined_call_operand.hbm [shape: f32[2,4,512], index: 0, kind: input, shape index: {}]
  %s1 = inlined_call_operand.hbm [shape: f32[9,4,384], index: 1, kind: input, shape index: {}]
  %s2 = inlined_call_operand.hbm [shape: f32[4,384], index: 2, kind: input, shape index: {}]
  %s3 = inlined_call_operand.hbm [shape: f32[4,8,384], index: 3, kind: input, shape index: {}]
  %s4 = inlined_call_operand.hbm [shape: f32[8,384], index: 4, kind: input, shape index: {}]
  %s5 = inlined_call_operand.hbm [shape: f32[2,8,384], index: 5, kind: output, shape index: {}]
  %s6 = sld [smem:[#allocation0]]
  $region73: #{tpu_custom_call.1} parent=0
    _
  %s8 = ssub.s32 1, %s6
  %s9 = scalar_select 0, %s8, %s6
  $region1: #{tpu_custom_call.1} parent=0
    #allocation2 [shape = 'u8[16384]{0}', space=vmem, size = 0x4000, scoped, tag = 'input window, operand 0']
    #allocation3 [shape = 's32[2]{0}', space=sflag, size = 0x8, scoped, tag = 'scoped memory for tpu_custom_call.1']
    #allocation4 [shape = 's32[2]{0}', space=sflag, size = 0x8, scoped, tag = 'scoped memory for tpu_custom_call.1']
    #allocation5 [shape = 'u8[55296]{0}', space=vmem, size = 0xd800, scoped, tag = 'input window, operand 1, single buffered']
    #allocation6 [shape = 's32[1]{0}', space=sflag, size = 0x4, scoped, tag = 'scoped memory for tpu_custom_call.1']
    #allocation7 [shape = 'u8[6144]{0}', space=vmem, size = 0x1800, scoped, tag = 'input window, operand 2, single buffered']
    #allocation8 [shape = 'u8[49152]{0}', space=vmem, size = 0xc000, scoped, tag = 'input window, operand 3, single buffered']
    #allocation9 [shape = 's32[1]{0}', space=sflag, size = 0x4, scoped, tag = 'scoped memory for tpu_custom_call.1']
    #allocation10 [shape = 'u8[12288]{0}', space=vmem, size = 0x3000, scoped, tag = 'input window, operand 4, single buffered']
    #allocation11 [shape = 'u8[24576]{0}', space=vmem, size = 0x6000, scoped, tag = 'output window, operand 0']
    %10 = vsyncpa [#allocation3], 0
    %s11 = scalar_lea.sflag [#allocation3], 1
    %12 = vsyncpa %s11, 0
    %13 = vsyncpa [#allocation6], 0
    %14 = vsyncpa [#allocation9], 0
    %15 = vsyncpa [#allocation4], 0
    %s16 = scalar_lea.sflag [#allocation4], 1
    %17 = vsyncpa %s16, 0
    loop: start=0, step=1, limit=4
    $region2: #{tpu_custom_call.1} parent=1 // loop_pre_header
      _
    $region3: #{tpu_custom_call.1} parent=1 // loop_header
      %s19 = sphi 0, %s23
      %p20 = scmp.ge.s32.totalorder %s19, 4
      %s26 = sphi 0, %s38
      %s27 = sphi 0, %s34
      %s28 = sphi 0, %s26
      %s29 = sphi 0, %s27
      %s30 = sphi 0, %s28
      %s31 = sphi 0, %s29
      %s41 = sphi 0, %s43
      %s44 = sphi 0, %s41
      %s45 = sphi 0, %s44
      %s61 = sphi 0, %s45
      %s65 = sphi 0, %s65
      %s67 = sphi 0, %s65
      %s68 = sphi 0, %s67
      %s82 = sphi 0, %s68
      %s86 = sphi 0, %s86
      %s88 = sphi 0, %s86
      %s89 = sphi 0, %s88
      %s103 = sphi 0, %s89
      %s107 = sphi 0, %s107
      %s109 = sphi 0, %s107
      %s110 = sphi 0, %s109
      %s124 = sphi 0, %s110
      %s128 = sphi 0, %s128
      %s130 = sphi 0, %s128
      %s131 = sphi 0, %s130
      %s145 = sphi 0, %s131
      %s153 = sphi 0, %s155
      %s156 = sphi 0, %s153
      %s157 = sphi 0, %s156
      %s173 = sphi 0, %s157
    $region4: #{tpu_custom_call.1} parent=1 // loop_header_branch
      %22 = sbr.rel (%p20) target = $region8
    $region5: #{tpu_custom_call.1} parent=1 // loop_body
      %s24 = ssub.s32 %s19, 1
      %s25 = ssub.s32 %s19, 2
      %s32 = sadd.s32 1, %s27
      %p33 = scmp.ge.s32.totalorder %s32, 1
      %s34 = scalar_select %p33, 0, %s32
      %s35 = sadd.s32 1, %s26
      %s36 = scalar_select %p33, %s35, %s26
      %p37 = scmp.ge.s32.totalorder %s36, 2
      %s38 = scalar_select %p37, 0, %s36
      %s39 = ssub.s32 %s26, %s38
      %p40 = scmp.eq.s32.totalorder %s39, 0
      %s42 = sadd.s32 %s41, 1
      %s43 = scalar_select %p40, %s41, %s42
      %p46 = pneg %p40
      %p47 = scmp.eq.s32.totalorder %s19, 1
      %p48 = por %p46, %p47
      %p49 = scmp.ne.s32.totalorder %s41, %s44
      %p50 = scmp.eq.s32.totalorder %s19, 0
      %p51 = por %p49, %p50
      %p52 = scmp.ne.s32.totalorder %s41, %s44
      %p53 = scmp.eq.s32.totalorder %s24, 1
      %p54 = por %p52, %p53
      %p55 = scmp.ne.s32.totalorder %s44, %s45
      %p56 = scmp.eq.s32.totalorder %s24, 0
      %p57 = por %p55, %p56
      %p58 = scmp.ne.s32.totalorder %s44, %s45
      %p59 = scmp.eq.s32.totalorder %s25, 1
      %p60 = por %p58, %p59
      %p62 = scmp.ne.s32.totalorder %s45, %s61
      %p63 = scmp.eq.s32.totalorder %s25, 0
      %p64 = por %p62, %p63
      %s66 = sadd.s32 %s65, 1
      %p69 = scmp.eq.s32.totalorder %s19, 1
      %p70 = scmp.ne.s32.totalorder %s65, %s67
      %p71 = scmp.eq.s32.totalorder %s19, 0
      %p72 = por %p70, %p71
      %p73 = scmp.ne.s32.totalorder %s65, %s67
      %p74 = scmp.eq.s32.totalorder %s24, 1
      %p75 = por %p73, %p74
      %p76 = scmp.ne.s32.totalorder %s67, %s68
      %p77 = scmp.eq.s32.totalorder %s24, 0
      %p78 = por %p76, %p77
      %p79 = scmp.ne.s32.totalorder %s67, %s68
      %p80 = scmp.eq.s32.totalorder %s25, 1
      %p81 = por %p79, %p80
      %p83 = scmp.ne.s32.totalorder %s68, %s82
      %p84 = scmp.eq.s32.totalorder %s25, 0
      %p85 = por %p83, %p84
      %s87 = sadd.s32 %s86, 1
      %p90 = scmp.eq.s32.totalorder %s19, 1
      %p91 = scmp.ne.s32.totalorder %s86, %s88
      %p92 = scmp.eq.s32.totalorder %s19, 0
      %p93 = por %p91, %p92
      %p94 = scmp.ne.s32.totalorder %s86, %s88
      %p95 = scmp.eq.s32.totalorder %s24, 1
      %p96 = por %p94, %p95
      %p97 = scmp.ne.s32.totalorder %s88, %s89
      %p98 = scmp.eq.s32.totalorder %s24, 0
      %p99 = por %p97, %p98
      %p100 = scmp.ne.s32.totalorder %s88, %s89
      %p101 = scmp.eq.s32.totalorder %s25, 1
      %p102 = por %p100, %p101
      %p104 = scmp.ne.s32.totalorder %s89, %s103
      %p105 = scmp.eq.s32.totalorder %s25, 0
      %p106 = por %p104, %p105
      %s108 = sadd.s32 %s107, 1
      %p111 = scmp.eq.s32.totalorder %s19, 1
      %p112 = scmp.ne.s32.totalorder %s107, %s109
      %p113 = scmp.eq.s32.totalorder %s19, 0
      %p114 = por %p112, %p113
      %p115 = scmp.ne.s32.totalorder %s107, %s109
      %p116 = scmp.eq.s32.totalorder %s24, 1
      %p117 = por %p115, %p116
      %p118 = scmp.ne.s32.totalorder %s109, %s110
      %p119 = scmp.eq.s32.totalorder %s24, 0
      %p120 = por %p118, %p119
      %p121 = scmp.ne.s32.totalorder %s109, %s110
      %p122 = scmp.eq.s32.totalorder %s25, 1
      %p123 = por %p121, %p122
      %p125 = scmp.ne.s32.totalorder %s110, %s124
      %p126 = scmp.eq.s32.totalorder %s25, 0
      %p127 = por %p125, %p126
      %s129 = sadd.s32 %s128, 1
      %p132 = scmp.eq.s32.totalorder %s19, 1
      %p133 = scmp.ne.s32.totalorder %s128, %s130
      %p134 = scmp.eq.s32.totalorder %s19, 0
      %p135 = por %p133, %p134
      %p136 = scmp.ne.s32.totalorder %s128, %s130
      %p137 = scmp.eq.s32.totalorder %s24, 1
      %p138 = por %p136, %p137
      %p139 = scmp.ne.s32.totalorder %s130, %s131
      %p140 = scmp.eq.s32.totalorder %s24, 0
      %p141 = por %p139, %p140
      %p142 = scmp.ne.s32.totalorder %s130, %s131
      %p143 = scmp.eq.s32.totalorder %s25, 1
      %p144 = por %p142, %p143
      %p146 = scmp.ne.s32.totalorder %s131, %s145
      %p147 = scmp.eq.s32.totalorder %s25, 0
      %p148 = por %p146, %p147
      %s149 = ssub.s32 %s26, %s38
      %s150 = ssub.s32 %s27, %s34
      %s151 = sor.u32 %s149, %s150
      %p152 = scmp.eq.s32.totalorder %s151, 0
      %s154 = sadd.s32 %s153, 1
      %s155 = scalar_select %p152, %s153, %s154
      %p158 = pneg %p152
      %p159 = scmp.eq.s32.totalorder %s19, 1
      %p160 = por %p158, %p159
      %p161 = scmp.ne.s32.totalorder %s153, %s156
      %p162 = scmp.eq.s32.totalorder %s19, 0
      %p163 = por %p161, %p162
      %p164 = scmp.ne.s32.totalorder %s153, %s156
      %p165 = scmp.eq.s32.totalorder %s24, 1
      %p166 = por %p164, %p165
      %p167 = scmp.ne.s32.totalorder %s156, %s157
      %p168 = scmp.eq.s32.totalorder %s24, 0
      %p169 = por %p167, %p168
      %p170 = scmp.ne.s32.totalorder %s156, %s157
      %p171 = scmp.eq.s32.totalorder %s25, 1
      %p172 = por %p170, %p171
      %p174 = scmp.ne.s32.totalorder %s157, %s173
      %p175 = scmp.eq.s32.totalorder %s25, 0
      %p176 = por %p174, %p175
      %p177 = scmp.le.s32.totalorder 1, %s19
      %p178 = scmp.lt.s32.totalorder %s19, 3
      %p179 = pnand %p177, %p178
      %p180 = pneg %p179
      // Predicated region
      $region9: #{tpu_custom_call.1} parent=5 // pred_check
        _
      $region10: #{tpu_custom_call.1} parent=5 // pred_check_branch
        %182 = sbr.rel (%p179) target = $region12
      $region11: #{tpu_custom_call.1} parent=5 // pred_region
        %s183 = ssub.s32 %s19, 1
        // Predicated region
        $region13: #{tpu_custom_call.1} parent=11 // pred_check
          %p184 = pneg %p78
        $region14: #{tpu_custom_call.1} parent=11 // pred_check_branch
          %186 = sbr.rel (%p184) target = $region16
        $region15: #{tpu_custom_call.1} parent=11 // pred_region
          %s188 = ssub.s32 1728, 1728
          %189 = vsyncadd [#allocation6], %s188
          %s190 = sshll.u32 [#allocation5], 4
          %s191 = int_to_ptr.vmem [resolvable:$true] %s190
          %196 = dma.hbm_to_vmem [thread:$0]  %s1, 1728, %s191, [#allocation6], 192, 192, 12
        $region16: #{tpu_custom_call.1} parent=11 // pred_fallthru
          _
        // Predicated region
        $region17: #{tpu_custom_call.1} parent=11 // pred_check
          %p197 = pneg %p99
        $region18: #{tpu_custom_call.1} parent=11 // pred_check_branch
          %199 = sbr.rel (%p197) target = $region20
        $region19: #{tpu_custom_call.1} parent=11 // pred_region
          %s201 = ssub.s32 192, 192
          %202 = vsyncadd [#allocation6], %s201
          %s204 = sshll.u32 [#allocation7], 4
          %s205 = int_to_ptr.vmem [resolvable:$true] %s204
          %207 = dma.hbm_to_vmem [thread:$0]  %s2, 192, %s205, [#allocation6]
        $region20: #{tpu_custom_call.1} parent=11 // pred_fallthru
          _
        // Predicated region
        $region21: #{tpu_custom_call.1} parent=11 // pred_check
          %p208 = pneg %p120
        $region22: #{tpu_custom_call.1} parent=11 // pred_check_branch
          %210 = sbr.rel (%p208) target = $region24
        $region23: #{tpu_custom_call.1} parent=11 // pred_region
          %s212 = ssub.s32 1536, 1536
          %213 = vsyncadd [#allocation9], %s212
          %s214 = sshll.u32 [#allocation8], 4
          %s215 = int_to_ptr.vmem [resolvable:$true] %s214
          %220 = dma.hbm_to_vmem [thread:$0]  %s3, 1536, %s215, [#allocation9], 384, 384, 24
        $region24: #{tpu_custom_call.1} parent=11 // pred_fallthru
          _
        // Predicated region
        $region25: #{tpu_custom_call.1} parent=11 // pred_check
          %p221 = pneg %p141
        $region26: #{tpu_custom_call.1} parent=11 // pred_check_branch
          %223 = sbr.rel (%p221) target = $region28
        $region27: #{tpu_custom_call.1} parent=11 // pred_region
          %s225 = ssub.s32 384, 384
          %226 = vsyncadd [#allocation9], %s225
          %s228 = sshll.u32 [#allocation10], 4
          %s229 = int_to_ptr.vmem [resolvable:$true] %s228
          %231 = dma.hbm_to_vmem [thread:$0]  %s4, 384, %s229, [#allocation9]
        $region28: #{tpu_custom_call.1} parent=11 // pred_fallthru
          _
      $region12: #{tpu_custom_call.1} parent=5 // pred_fallthru
        _
      %p232 = scmp.lt.s32.totalorder %s19, 2
      // Predicated region
      $region29: #{tpu_custom_call.1} parent=5 // pred_check
        %p233 = pneg %p232
      $region30: #{tpu_custom_call.1} parent=5 // pred_check_branch
        %235 = sbr.rel (%p233) target = $region32
      $region31: #{tpu_custom_call.1} parent=5 // pred_region
        // Predicated region
        $region33: #{tpu_custom_call.1} parent=31 // pred_check
          %p236 = pneg %p51
        $region34: #{tpu_custom_call.1} parent=31 // pred_check_branch
          %238 = sbr.rel (%p236) target = $region36
        $region35: #{tpu_custom_call.1} parent=31 // pred_region
          %s239 = sand.u32 %s41, 1
          %s240 = scalar_lea.sflag [#allocation3], %s239
          %s241 = sand.u32 %s41, 1
          %s242 = smul.addr %s241, 16
          %s243 = scalar_lea.vmem [#allocation2], %s242
          %s245 = ssub.s32 256, 256
          %246 = vsyncadd %s240, %s245
          %s247 = smul.addr %s26, 4
          %s248 = smul.addr %s247, 64
          %s249 = scalar_lea.hbm %s0, %s248
          %s251 = sshll.u32 %s243, 4
          %s252 = int_to_ptr.vmem [resolvable:$true] %s251
          %254 = dma.hbm_to_vmem [thread:$0]  %s249, 256, %s252, %s240
        $region36: #{tpu_custom_call.1} parent=31 // pred_fallthru
          _
      $region32: #{tpu_custom_call.1} parent=5 // pred_fallthru
        _
      %p255 = scmp.le.s32.totalorder 1, %s19
      %p256 = scmp.lt.s32.totalorder %s19, 3
      %p257 = pnand %p255, %p256
      %p258 = pneg %p257
      // Predicated region
      $region37: #{tpu_custom_call.1} parent=5 // pred_check
        _
      $region38: #{tpu_custom_call.1} parent=5 // pred_check_branch
        %260 = sbr.rel (%p257) target = $region40
      $region39: #{tpu_custom_call.1} parent=5 // pred_region
        %s261 = ssub.s32 %s19, 1
        %s262 = sand.u32 %s44, 1
        %s263 = scalar_lea.sflag [#allocation3], %s262
        %s264 = sand.u32 %s44, 1
        %s265 = smul.addr %s264, 16
        %s266 = scalar_lea.vmem [#allocation2], %s265
        // Predicated region
        $region41: #{tpu_custom_call.1} parent=39 // pred_check
          %p267 = pneg %p57
        $region42: #{tpu_custom_call.1} parent=39 // pred_check_branch
          %269 = sbr.rel (%p267) target = $region44
        $region43: #{tpu_custom_call.1} parent=39 // pred_region
          %270 = dma.done %s263, 256
        $region44: #{tpu_custom_call.1} parent=39 // pred_fallthru
          _
        // Predicated region
        $region45: #{tpu_custom_call.1} parent=39 // pred_check
          %p271 = pneg %p78
        $region46: #{tpu_custom_call.1} parent=39 // pred_check_branch
          %273 = sbr.rel (%p271) target = $region48
        $region47: #{tpu_custom_call.1} parent=39 // pred_region
          %274 = dma.done [#allocation6], 1728
        $region48: #{tpu_custom_call.1} parent=39 // pred_fallthru
          _
        // Predicated region
        $region49: #{tpu_custom_call.1} parent=39 // pred_check
          %p275 = pneg %p99
        $region50: #{tpu_custom_call.1} parent=39 // pred_check_branch
          %277 = sbr.rel (%p275) target = $region52
        $region51: #{tpu_custom_call.1} parent=39 // pred_region
          %278 = dma.done [#allocation6], 192
        $region52: #{tpu_custom_call.1} parent=39 // pred_fallthru
          _
        // Predicated region
        $region53: #{tpu_custom_call.1} parent=39 // pred_check
          %p279 = pneg %p120
        $region54: #{tpu_custom_call.1} parent=39 // pred_check_branch
          %281 = sbr.rel (%p279) target = $region56
        $region55: #{tpu_custom_call.1} parent=39 // pred_region
          %282 = dma.done [#allocation9], 1536
        $region56: #{tpu_custom_call.1} parent=39 // pred_fallthru
          _
        // Predicated region
        $region57: #{tpu_custom_call.1} parent=39 // pred_check
          %p283 = pneg %p141
        $region58: #{tpu_custom_call.1} parent=39 // pred_check_branch
          %285 = sbr.rel (%p283) target = $region60
        $region59: #{tpu_custom_call.1} parent=39 // pred_region
          %286 = dma.done [#allocation9], 384
        $region60: #{tpu_custom_call.1} parent=39 // pred_fallthru
          _
        %s287 = sand.u32 %s44, 1
        %s288 = scalar_lea.sflag [#allocation3], %s287
        %s289 = sand.u32 %s44, 1
        %s290 = smul.addr %s289, 16
        %s291 = scalar_lea.vmem [#allocation2], %s290
        %p292 = pneg %p57
        %p293 = pneg %p54
        %p294 = pneg %p78
        %p295 = pneg %p75
        %p296 = pneg %p99
        %p297 = pneg %p96
        %p298 = pneg %p120
        %p299 = pneg %p117
        %p300 = pneg %p141
        %p301 = pneg %p138
        %p302 = pneg %p169
        %p303 = pneg %p166
        %s304 = sand.u32 %s156, 1
        %s305 = scalar_lea.sflag [#allocation4], %s304
        %s306 = sand.u32 %s156, 1
        %s307 = smul.addr %s306, 24
        %s308 = scalar_lea.vmem [#allocation11], %s307
        %s309 = smul.u32 3, %s29
        %v310 = vld [vmem:[%s266] sm:$0xff]
        %v311 = vld [vmem:[%s266 + $0x8] sm:$0xff]
        %v312 = vld [vmem:[#allocation7] sm:$0xff]
        %v313 = vld [vmem:[#allocation7 + $0x8] sm:$0xf]
        %v314 = vld [vmem:[#allocation5] sm:$0xff]
        %v315 = vld [vmem:[#allocation5 + $0x8] sm:$0xf]
        %v316 = vmul.f32 %v310, %v314
        %v317 = vmul.f32 %v311, %v315
        %v318 = vadd.f32 %v312, %v316
        %v319 = vadd.f32 %v313, %v317
        %s320 = scalar_lea.vmem [#allocation5], 12
        %v321 = vld [vmem:[%s320] sm:$0xff]
        %v322 = vld [vmem:[%s320 + $0x8] sm:$0xf]
        %325 = vrot.lane.b32.xlu0 %v321, 1
        %v326 = vpop.permute.xlu0 %325
        %327 = vrot.lane.b32.xlu0 %v322, 1
        %v328 = vpop.permute.xlu0 %327
        %v329 = vrot.slane %v326, 4
        %v330 = vrot.slane %v328, 4
        %vm331 = vcmask 7168
        %v332 = vsel %vm331, %v329, %v326
        %vm333 = vcmask 1043456
        %v334 = vsel %vm333, %v329, %v330
        %v335 = vsel %vm331, %v334, %v328
        %v338 = vmul.f32 %v310, %v332
        %v339 = vmul.f32 %v311, %v335
        %342 = vrot.lane.b32.xlu0 %v338, 127
        %v343 = vpop.permute.xlu0 %342
        %344 = vrot.lane.b32.xlu0 %v339, 127
        %v345 = vpop.permute.xlu0 %344
        %v346 = vrot.slane %v343, 4
        %v347 = vrot.slane %v345, 4
        %v348 = vsel %vm333, %v346, %v347
        %vm349 = vcmask 1039360
        %v350 = vsel %vm349, %v343, %v348
        %v351 = vsel %vm349, %v345, %v347
        %v354 = vadd.f32 %v318, %v350
        %v355 = vadd.f32 %v319, %v351
        %s356 = scalar_lea.vmem [#allocation5], 24
        %v357 = vld [vmem:[%s356] sm:$0xff]
        %v358 = vld [vmem:[%s356 + $0x8] sm:$0xf]
        %361 = vrot.lane.b32.xlu0 %v357, 2
        %v362 = vpop.permute.xlu0 %361
        %363 = vrot.lane.b32.xlu0 %v358, 2
        %v364 = vpop.permute.xlu0 %363
        %v365 = vrot.slane %v362, 4
        %v366 = vrot.slane %v364, 4
        %vm367 = vcmask 15360
        %v368 = vsel %vm367, %v365, %v362
        %v369 = vsel %vm333, %v365, %v366
        %v370 = vsel %vm367, %v369, %v364
        %v373 = vmul.f32 %v310, %v368
        %v374 = vmul.f32 %v311, %v370
        %377 = vrot.lane.b32.xlu0 %v373, 126
        %v378 = vpop.permute.xlu0 %377
        %379 = vrot.lane.b32.xlu0 %v374, 126
        %v380 = vpop.permute.xlu0 %379
        %v381 = vrot.slane %v378, 4
        %v382 = vrot.slane %v380, 4
        %v383 = vsel %vm333, %v381, %v382
        %vm384 = vcmask 1031168
        %v385 = vsel %vm384, %v378, %v383
        %v386 = vsel %vm384, %v380, %v382
        %v389 = vadd.f32 %v354, %v385
        %v390 = vadd.f32 %v355, %v386
        %s391 = scalar_lea.vmem [#allocation5], 36
        %v392 = vld [vmem:[%s391] sm:$0xff]
        %v393 = vld [vmem:[%s391 + $0x8] sm:$0xf]
        %396 = vrot.lane.b32.xlu0 %v392, 20
        %v397 = vpop.permute.xlu0 %396
        %398 = vrot.lane.b32.xlu0 %v393, 20
        %v399 = vpop.permute.xlu0 %398
        %v400 = vrot.slane %v397, 4
        %v401 = vrot.slane %v399, 4
        %vm402 = vcmask 162816
        %v403 = vsel %vm402, %v400, %v397
        %v404 = vsel %vm333, %v400, %v401
        %v405 = vsel %vm402, %v404, %v399
        %v408 = vmul.f32 %v310, %v403
        %v409 = vmul.f32 %v311, %v405
        %412 = vrot.lane.b32.xlu0 %v408, 108
        %v413 = vpop.permute.xlu0 %412
        %414 = vrot.lane.b32.xlu0 %v409, 108
        %v415 = vpop.permute.xlu0 %414
        %v416 = vrot.slane %v413, 4
        %v417 = vrot.slane %v415, 4
        %v418 = vsel %vm333, %v416, %v417
        %vm419 = vcmask 883712
        %v420 = vsel %vm419, %v413, %v418
        %v421 = vsel %vm419, %v415, %v417
        %v424 = vadd.f32 %v389, %v420
        %v425 = vadd.f32 %v390, %v421
        %s426 = scalar_lea.vmem [#allocation5], 48
        %v427 = vld [vmem:[%s426] sm:$0xff]
        %v428 = vld [vmem:[%s426 + $0x8] sm:$0xf]
        %431 = vrot.lane.b32.xlu0 %v427, 21
        %v432 = vpop.permute.xlu0 %431
        %433 = vrot.lane.b32.xlu0 %v428, 21
        %v434 = vpop.permute.xlu0 %433
        %v435 = vrot.slane %v432, 4
        %v436 = vrot.slane %v434, 4
        %vm437 = vcmask 171008
        %v438 = vsel %vm437, %v435, %v432
        %v439 = vsel %vm333, %v435, %v436
        %v440 = vsel %vm437, %v439, %v434
        %v443 = vmul.f32 %v310, %v438
        %v444 = vmul.f32 %v311, %v440
        %447 = vrot.lane.b32.xlu0 %v443, 107
        %v448 = vpop.permute.xlu0 %447
        %449 = vrot.lane.b32.xlu0 %v444, 107
        %v450 = vpop.permute.xlu0 %449
        %v451 = vrot.slane %v448, 4
        %v452 = vrot.slane %v450, 4
        %v453 = vsel %vm333, %v451, %v452
        %vm454 = vcmask 875520
        %v455 = vsel %vm454, %v448, %v453
        %v456 = vsel %vm454, %v450, %v452
        %v459 = vadd.f32 %v424, %v455
        %v460 = vadd.f32 %v425, %v456
        %s461 = scalar_lea.vmem [#allocation5], 60
        %v462 = vld [vmem:[%s461] sm:$0xff]
        %v463 = vld [vmem:[%s461 + $0x8] sm:$0xf]
        %466 = vrot.lane.b32.xlu0 %v462, 22
        %v467 = vpop.permute.xlu0 %466
        %468 = vrot.lane.b32.xlu0 %v463, 22
        %v469 = vpop.permute.xlu0 %468
        %v470 = vrot.slane %v467, 4
        %v471 = vrot.slane %v469, 4
        %vm472 = vcmask 179200
        %v473 = vsel %vm472, %v470, %v467
        %v474 = vsel %vm333, %v470, %v471
        %v475 = vsel %vm472, %v474, %v469
        %v478 = vmul.f32 %v310, %v473
        %v479 = vmul.f32 %v311, %v475
        %482 = vrot.lane.b32.xlu0 %v478, 106
        %v483 = vpop.permute.xlu0 %482
        %484 = vrot.lane.b32.xlu0 %v479, 106
        %v485 = vpop.permute.xlu0 %484
        %v486 = vrot.slane %v483, 4
        %v487 = vrot.slane %v485, 4
        %v488 = vsel %vm333, %v486, %v487
        %vm489 = vcmask 867328
        %v490 = vsel %vm489, %v483, %v488
        %v491 = vsel %vm489, %v485, %v487
        %v494 = vadd.f32 %v459, %v490
        %v495 = vadd.f32 %v460, %v491
        %s496 = scalar_lea.vmem [#allocation5], 72
        %v497 = vld [vmem:[%s496] sm:$0xff]
        %v498 = vld [vmem:[%s496 + $0x8] sm:$0xf]
        %501 = vrot.lane.b32.xlu0 %v497, 40
        %v502 = vpop.permute.xlu0 %501
        %503 = vrot.lane.b32.xlu0 %v498, 40
        %v504 = vpop.permute.xlu0 %503
        %v505 = vrot.slane %v502, 4
        %v506 = vrot.slane %v504, 4
        %vm507 = vcmask 326656
        %v508 = vsel %vm507, %v505, %v502
        %v509 = vsel %vm333, %v505, %v506
        %v510 = vsel %vm507, %v509, %v504
        %v513 = vmul.f32 %v310, %v508
        %v514 = vmul.f32 %v311, %v510
        %517 = vrot.lane.b32.xlu0 %v513, 88
        %v518 = vpop.permute.xlu0 %517
        %519 = vrot.lane.b32.xlu0 %v514, 88
        %v520 = vpop.permute.xlu0 %519
        %v521 = vrot.slane %v518, 4
        %v522 = vrot.slane %v520, 4
        %v523 = vsel %vm333, %v521, %v522
        %vm524 = vcmask 719872
        %v525 = vsel %vm524, %v518, %v523
        %v526 = vsel %vm524, %v520, %v522
        %v529 = vadd.f32 %v494, %v525
        %v530 = vadd.f32 %v495, %v526
        %s531 = scalar_lea.vmem [#allocation5], 84
        %v532 = vld [vmem:[%s531] sm:$0xff]
        %v533 = vld [vmem:[%s531 + $0x8] sm:$0xf]
        %536 = vrot.lane.b32.xlu0 %v532, 41
        %v537 = vpop.permute.xlu0 %536
        %538 = vrot.lane.b32.xlu0 %v533, 41
        %v539 = vpop.permute.xlu0 %538
        %v540 = vrot.slane %v537, 4
        %v541 = vrot.slane %v539, 4
        %vm542 = vcmask 334848
        %v543 = vsel %vm542, %v540, %v537
        %v544 = vsel %vm333, %v540, %v541
        %v545 = vsel %vm542, %v544, %v539
        %v548 = vmul.f32 %v310, %v543
        %v549 = vmul.f32 %v311, %v545
        %552 = vrot.lane.b32.xlu0 %v548, 87
        %v553 = vpop.permute.xlu0 %552
        %554 = vrot.lane.b32.xlu0 %v549, 87
        %v555 = vpop.permute.xlu0 %554
        %v556 = vrot.slane %v553, 4
        %v557 = vrot.slane %v555, 4
        %v558 = vsel %vm333, %v556, %v557
        %vm559 = vcmask 711680
        %v560 = vsel %vm559, %v553, %v558
        %v561 = vsel %vm559, %v555, %v557
        %v564 = vadd.f32 %v529, %v560
        %v565 = vadd.f32 %v530, %v561
        %s566 = scalar_lea.vmem [#allocation5], 96
        %v567 = vld [vmem:[%s566] sm:$0xff]
        %v568 = vld [vmem:[%s566 + $0x8] sm:$0xf]
        %571 = vrot.lane.b32.xlu0 %v567, 42
        %v572 = vpop.permute.xlu0 %571
        %573 = vrot.lane.b32.xlu0 %v568, 42
        %v574 = vpop.permute.xlu0 %573
        %v575 = vrot.slane %v572, 4
        %v576 = vrot.slane %v574, 4
        %vm577 = vcmask 343040
        %v578 = vsel %vm577, %v575, %v572
        %v579 = vsel %vm333, %v575, %v576
        %v580 = vsel %vm577, %v579, %v574
        %v583 = vmul.f32 %v310, %v578
        %v584 = vmul.f32 %v311, %v580
        %587 = vrot.lane.b32.xlu0 %v583, 86
        %v588 = vpop.permute.xlu0 %587
        %589 = vrot.lane.b32.xlu0 %v584, 86
        %v590 = vpop.permute.xlu0 %589
        %v591 = vrot.slane %v588, 4
        %v592 = vrot.slane %v590, 4
        %v593 = vsel %vm333, %v591, %v592
        %vm594 = vcmask 703488
        %v595 = vsel %vm594, %v588, %v593
        %v596 = vsel %vm594, %v590, %v592
        %v599 = vadd.f32 %v564, %v595
        %v600 = vadd.f32 %v565, %v596
        %v601 = vld [vmem:[#allocation10] sm:$0xff]
        %v602 = vld [vmem:[#allocation10 + $0x8] sm:$0xff]
        %v603 = vld [vmem:[#allocation10 + $0x10] sm:$0xff]
        %v606 = vlaneseq
        %v607 = vshrl.u32 %v606, 7
        %v608 = vsub.s32 0, %v607
        %v609 = vrot.slane %v599, %v608
        %v610 = vlaneseq
        %v611 = vshrl.u32 %v610, 7
        %v612 = vsub.s32 4, %v611
        %v613 = vrot.slane %v599, %v612
        %v614 = vlaneseq
        %v615 = vshrl.u32 %v614, 7
        %v616 = vsub.s32 0, %v615
        %v617 = vrot.slane %v600, %v616
        %v621 = vlaneseq
        %v622 = vshrl.u32 %v621, 7
        %v623 = vsub.s32 0, %v622
        %v624 = vrot.slane %v609, %v623
        %v625 = vlaneseq
        %v626 = vshrl.u32 %v625, 7
        %v627 = vsub.s32 0, %v626
        %v628 = vrot.slane %v613, %v627
        %v629 = vlaneseq
        %v630 = vshrl.u32 %v629, 7
        %v631 = vsub.s32 0, %v630
        %v632 = vrot.slane %v617, %v631
        %v633 = vld [vmem:[#allocation8] sm:$0xff]
        %v634 = vld [vmem:[#allocation8 + $0x8] sm:$0xff]
        %v635 = vld [vmem:[#allocation8 + $0x10] sm:$0xff]
        %v636 = vmul.f32 %v624, %v633
        %v637 = vmul.f32 %v628, %v634
        %v638 = vmul.f32 %v632, %v635
        %v639 = vadd.f32 %v601, %v636
        %v640 = vadd.f32 %v602, %v637
        %v641 = vadd.f32 %v603, %v638
        %v642 = vlaneseq
        %v643 = vshrl.u32 %v642, 7
        %v644 = vsub.s32 1, %v643
        %v645 = vrot.slane %v599, %v644
        %v646 = vlaneseq
        %v647 = vshrl.u32 %v646, 7
        %v648 = vsub.s32 5, %v647
        %v649 = vrot.slane %v599, %v648
        %v650 = vlaneseq
        %v651 = vshrl.u32 %v650, 7
        %v652 = vsub.s32 1, %v651
        %v653 = vrot.slane %v600, %v652
        %v657 = vlaneseq
        %v658 = vshrl.u32 %v657, 7
        %v659 = vsub.s32 1, %v658
        %v660 = vrot.slane %v645, %v659
        %v661 = vlaneseq
        %v662 = vshrl.u32 %v661, 7
        %v663 = vsub.s32 1, %v662
        %v664 = vrot.slane %v649, %v663
        %v665 = vlaneseq
        %v666 = vshrl.u32 %v665, 7
        %v667 = vsub.s32 1, %v666
        %v668 = vrot.slane %v653, %v667
        %s669 = scalar_lea.vmem [#allocation8], 24
        %v670 = vld [vmem:[%s669] sm:$0xff]
        %v671 = vld [vmem:[%s669 + $0x8] sm:$0xff]
        %v672 = vld [vmem:[%s669 + $0x10] sm:$0xff]
        %v673 = vmul.f32 %v660, %v670
        %v674 = vmul.f32 %v664, %v671
        %v675 = vmul.f32 %v668, %v672
        %v676 = vadd.f32 %v639, %v673
        %v677 = vadd.f32 %v640, %v674
        %v678 = vadd.f32 %v641, %v675
        %v679 = vlaneseq
        %v680 = vshrl.u32 %v679, 7
        %v681 = vsub.s32 2, %v680
        %v682 = vrot.slane %v599, %v681
        %v683 = vlaneseq
        %v684 = vshrl.u32 %v683, 7
        %v685 = vsub.s32 6, %v684
        %v686 = vrot.slane %v599, %v685
        %v687 = vlaneseq
        %v688 = vshrl.u32 %v687, 7
        %v689 = vsub.s32 2, %v688
        %v690 = vrot.slane %v600, %v689
        %v694 = vlaneseq
        %v695 = vshrl.u32 %v694, 7
        %v696 = vsub.s32 2, %v695
        %v697 = vrot.slane %v682, %v696
        %v698 = vlaneseq
        %v699 = vshrl.u32 %v698, 7
        %v700 = vsub.s32 2, %v699
        %v701 = vrot.slane %v686, %v700
        %v702 = vlaneseq
        %v703 = vshrl.u32 %v702, 7
        %v704 = vsub.s32 2, %v703
        %v705 = vrot.slane %v690, %v704
        %s706 = scalar_lea.vmem [#allocation8], 48
        %v707 = vld [vmem:[%s706] sm:$0xff]
        %v708 = vld [vmem:[%s706 + $0x8] sm:$0xff]
        %v709 = vld [vmem:[%s706 + $0x10] sm:$0xff]
        %v710 = vmul.f32 %v697, %v707
        %v711 = vmul.f32 %v701, %v708
        %v712 = vmul.f32 %v705, %v709
        %v713 = vadd.f32 %v676, %v710
        %v714 = vadd.f32 %v677, %v711
        %v715 = vadd.f32 %v678, %v712
        %v716 = vlaneseq
        %v717 = vshrl.u32 %v716, 7
        %v718 = vsub.s32 3, %v717
        %v719 = vrot.slane %v599, %v718
        %v720 = vlaneseq
        %v721 = vshrl.u32 %v720, 7
        %v722 = vsub.s32 7, %v721
        %v723 = vrot.slane %v599, %v722
        %v724 = vlaneseq
        %v725 = vshrl.u32 %v724, 7
        %v726 = vsub.s32 3, %v725
        %v727 = vrot.slane %v600, %v726
        %v731 = vlaneseq
        %v732 = vshrl.u32 %v731, 7
        %v733 = vsub.s32 3, %v732
        %v734 = vrot.slane %v719, %v733
        %v735 = vlaneseq
        %v736 = vshrl.u32 %v735, 7
        %v737 = vsub.s32 3, %v736
        %v738 = vrot.slane %v723, %v737
        %v739 = vlaneseq
        %v740 = vshrl.u32 %v739, 7
        %v741 = vsub.s32 3, %v740
        %v742 = vrot.slane %v727, %v741
        %s743 = scalar_lea.vmem [#allocation8], 72
        %v744 = vld [vmem:[%s743] sm:$0xff]
        %v745 = vld [vmem:[%s743 + $0x8] sm:$0xff]
        %v746 = vld [vmem:[%s743 + $0x10] sm:$0xff]
        %v747 = vmul.f32 %v734, %v744
        %v748 = vmul.f32 %v738, %v745
        %v749 = vmul.f32 %v742, %v746
        %v750 = vadd.f32 %v713, %v747
        %v751 = vadd.f32 %v714, %v748
        %v752 = vadd.f32 %v715, %v749
        %753 = vst [vmem:[%s308] sm:$0xff] %v750
        %754 = vst [vmem:[%s308 + $0x8] sm:$0xff] %v751
        %755 = vst [vmem:[%s308 + $0x10] sm:$0xff] %v752
        %s756 = sand.u32 %s156, 1
        %s757 = scalar_lea.sflag [#allocation4], %s756
        %s758 = sand.u32 %s156, 1
        %s759 = smul.addr %s758, 24
        %s760 = scalar_lea.vmem [#allocation11], %s759
        // Predicated region
        $region61: #{tpu_custom_call.1} parent=39 // pred_check
          %p761 = pneg %p166
        $region62: #{tpu_custom_call.1} parent=39 // pred_check_branch
          %763 = sbr.rel (%p761) target = $region64
        $region63: #{tpu_custom_call.1} parent=39 // pred_region
          %s764 = smul.u32 3, %s29
          %s766 = ssub.s32 384, 384
          %767 = vsyncadd %s757, %s766
          %s768 = smul.addr %s28, 3
          %s769 = sadd.s32 %s764, %s768
          %s770 = smul.addr %s769, 128
          %s771 = scalar_lea.hbm %s5, %s770
          %s773 = sshll.u32 %s760, 4
          %s774 = int_to_ptr.vmem [resolvable:$true] %s773
          %776 = dma.vmem_to_hbm [thread:$0]  %s774, 384, %s771, %s757
        $region64: #{tpu_custom_call.1} parent=39 // pred_fallthru
          _
      $region40: #{tpu_custom_call.1} parent=5 // pred_fallthru
        _
      %p777 = scmp.le.s32.totalorder 2, %s19
      // Predicated region
      $region65: #{tpu_custom_call.1} parent=5 // pred_check
        %p778 = pneg %p777
      $region66: #{tpu_custom_call.1} parent=5 // pred_check_branch
        %780 = sbr.rel (%p778) target = $region68
      $region67: #{tpu_custom_call.1} parent=5 // pred_region
        %s781 = ssub.s32 %s19, 2
        // Predicated region
        $region69: #{tpu_custom_call.1} parent=67 // pred_check
          %p782 = pneg %p172
        $region70: #{tpu_custom_call.1} parent=67 // pred_check_branch
          %784 = sbr.rel (%p782) target = $region72
        $region71: #{tpu_custom_call.1} parent=67 // pred_region
          %s785 = sand.u32 %s157, 1
          %s786 = scalar_lea.sflag [#allocation4], %s785
          %s787 = sand.u32 %s157, 1
          %s788 = smul.addr %s787, 24
          %s789 = scalar_lea.vmem [#allocation11], %s788
          %790 = dma.done %s786, 384
        $region72: #{tpu_custom_call.1} parent=67 // pred_fallthru
          _
      $region68: #{tpu_custom_call.1} parent=5 // pred_fallthru
        _
    $region6: #{tpu_custom_call.1} parent=1 // loop_footer
      %s23 = sadd.s32 1, %s19
    $region7: #{tpu_custom_call.1} parent=1 // loop_footer_branch
      %18 = sbr.rel target = $region3
    $region8: #{tpu_custom_call.1} parent=1 // loop_exit
      _
    %791 = vsyncpa [#allocation3], 1
    %s792 = scalar_lea.sflag [#allocation3], 1
    %793 = vsyncpa %s792, 1
    %794 = vsyncpa [#allocation6], 1
    %795 = vsyncpa [#allocation9], 1
    %796 = vsyncpa [#allocation4], 1
    %s797 = scalar_lea.sflag [#allocation4], 1
    %798 = vsyncpa %s797, 1

</llo_original>
